<compile_context>
chip_gen: v7x
topology: tpu7x:2x2x1
jax: 0.10.0
libtpu: 0.0.40
codegen_flags: <defaults>
</compile_context>

<pallas_src>
import math
import functools

import jax
import jax.numpy as jnp
from jax.experimental import pallas as pl
from jax.experimental.pallas import tpu as pltpu

F32 = jnp.float32
BF16 = jnp.bfloat16


def _round_up(v, m):
  return -(-v // m) * m


# ----------------------------------------------------------------------------
# Kernel 1: fused node-level projection  x @ [wq|wk|wv|ws] + [bq|bk|bv|bs]
# ----------------------------------------------------------------------------
def _project_kernel(x_ref, w_ref, b_ref, out_ref):
  out_ref[...] = (
      jnp.dot(x_ref[...], w_ref[...], preferred_element_type=F32) + b_ref[...]
  ).astype(out_ref.dtype)


# ----------------------------------------------------------------------------
# Kernel 2: edge prepass (runs ONCE per edge)
#   alpha[e,h] = <q_h, k_h + e_h> / sqrt(C);  vadj = v + e_proj  (bf16)
# ----------------------------------------------------------------------------
def _edge_prepass_kernel(q_ref, k_ref, v_ref, ea_ref, we_ref, pool_ref,
                         alpha_ref, vadj_ref, *, num_edges, edge_tile):
  e_proj = jnp.dot(ea_ref[...], we_ref[...], preferred_element_type=F32)
  q = q_ref[...].astype(F32)
  k = k_ref[...].astype(F32) + e_proj
  v = v_ref[...].astype(F32) + e_proj
  alpha = jnp.dot(q * k, pool_ref[...], preferred_element_type=F32)   # [TE, H]
  # Padded edges get -1e30 so exp() makes them exactly zero downstream.
  eidx = (jax.lax.broadcasted_iota(jnp.int32, alpha.shape, 0)
          + pl.program_id(0) * edge_tile)
  alpha_ref[...] = jnp.where(eidx < num_edges, alpha, -1e30)
  vadj_ref[...] = v.astype(vadj_ref.dtype)


# ----------------------------------------------------------------------------
# Kernel 3: edge scatter-weights (runs ONCE per edge)
#   w_ext[:, h*C:(h+1)*C] = exp(alpha_h - mx_h) * vadj_h
#   w_ext[:, HC + h]      = exp(alpha_h - mx_h)        (softmax denominator column)
# ----------------------------------------------------------------------------
def _edge_weight_kernel(alpha_ref, vadj_ref, mx_ref, rep_all_ref, den_ref, out_ref):
  expv = jnp.exp(alpha_ref[...] - mx_ref[...])                              # [TE, H]
  er = jnp.dot(expv, rep_all_ref[...], preferred_element_type=F32)          # [TE, HCp]
  out_ref[...] = (er * (vadj_ref[...].astype(F32) + den_ref[...])).astype(out_ref.dtype)


# ----------------------------------------------------------------------------
# Kernel 4: one-hot MXU scatter + softmax normalization + skip add
# ----------------------------------------------------------------------------
def _aggregate_kernel(dst_ref, w_ref, rep_val_ref, skip_ref, out_ref, acc_ref,
                      *, node_tile, edge_tile, heads, hc):
  n_idx = pl.program_id(0)
  e_idx = pl.program_id(1)

  @pl.when(e_idx == 0)
  def _init():
    acc_ref[...] = jnp.zeros(acc_ref.shape, acc_ref.dtype)

  node_ids = (jax.lax.broadcasted_iota(jnp.int32, (node_tile, edge_tile), 0)
              + n_idx * node_tile)
  s_mat = (node_ids == dst_ref[...]).astype(BF16)                           # [TN, TE]
  acc_ref[...] += jnp.dot(s_mat, w_ref[...], preferred_element_type=F32)    # [TN, HCp]

  @pl.when(e_idx == pl.num_programs(1) - 1)
  def _finalize():
    acc = acc_ref[...]
    sum_exp = acc[:, hc:hc + heads]                                         # [TN, H]
    inv = pl.reciprocal(sum_exp + 1e-16, approx=True)                       # EUP
    inv_rep = jnp.dot(inv, rep_val_ref[...], preferred_element_type=F32)    # [TN, HCp]
    out_ref[...] = (acc * inv_rep + skip_ref[...]).astype(out_ref.dtype)


# ----------------------------------------------------------------------------
# Wrapper
# ----------------------------------------------------------------------------
def transformer_conv(x, edge_index, edge_attr, params, *, heads, out_channels,
                     node_tile=256, edge_tile=512):
  """x: [N, Cin] f32, edge_index: [2, E] int32, edge_attr: [E, De] f32.

  Tiling defaults (node_tile=256, edge_tile=512) target v6e/v7x MXU (2x256);
  on v5e node_tile=128 / edge_tile=512 is also fine.  VMEM use per step is ~1 MiB,
  well under the scoped limit on every generation (incl. v7x's 64 MiB physical).
  """
  assert node_tile % 8 == 0, "node_tile must be a multiple of 8"
  assert edge_tile % 128 == 0, "edge_tile must be a multiple of 128"
  N, cin = x.shape
  E = edge_index.shape[1]
  H, C = heads, out_channels
  HC = H * C
  de = edge_attr.shape[1]

  # Pad HC so every edge/node stream is lane-dense AND the H softmax-denominator
  # columns fit inside the padding region [HC, HC+H).
  HCp = _round_up(HC + H, 128)

  n_pad = _round_up(N, node_tile)
  e_pad = _round_up(E, edge_tile)

  # ---- 1) fused node-granularity projection (bf16 MXU, f32 accumulate) -----
  def padw(w):
    return jnp.pad(w, ((0, 0), (0, HCp - HC)))

  w_all = jnp.concatenate(
      [padw(params["wq"]), padw(params["wk"]),
       padw(params["wv"]), padw(params["ws"])], axis=1).astype(BF16)        # [Cin, 4HCp]
  b_all = jnp.concatenate(
      [padw(params["bq"]), padw(params["bk"]),
       padw(params["bv"]), padw(params["bs"])], axis=1).astype(F32)         # [1, 4HCp]
  x_pad = jnp.pad(x, ((0, n_pad - N), (0, 0))).astype(BF16)

  proj = pl.pallas_call(
      _project_kernel,
      out_shape=jax.ShapeDtypeStruct((n_pad, 4 * HCp), F32),
      grid_spec=pltpu.PrefetchScalarGridSpec(
          num_scalar_prefetch=0,
          grid=(n_pad // node_tile,),
          in_specs=[
              pl.BlockSpec((node_tile, cin), lambda i: (i, 0)),
              pl.BlockSpec((cin, 4 * HCp), lambda i: (0, 0)),
              pl.BlockSpec((1, 4 * HCp), lambda i: (0, 0)),
          ],
          out_specs=pl.BlockSpec((node_tile, 4 * HCp), lambda i: (i, 0)),
      ),
      compiler_params=pltpu.CompilerParams(dimension_semantics=("parallel",)),
  )(x_pad, w_all, b_all)

  q_n = proj[:, 0 * HCp:1 * HCp].astype(BF16)
  k_n = proj[:, 1 * HCp:2 * HCp].astype(BF16)
  v_n = proj[:, 2 * HCp:3 * HCp].astype(BF16)
  skip = proj[:, 3 * HCp:4 * HCp]                                           # f32

  # ---- 2) gathers: pad the INDICES first, gather once in bf16 --------------
  src = edge_index[0].astype(jnp.int32)
  dst = edge_index[1].astype(jnp.int32)
  pad_e = e_pad - E
  src_g = jnp.pad(src, (0, pad_e))                      # valid index for gather
  dst_g = jnp.pad(dst, (0, pad_e))
  dst_m = jnp.pad(dst, (0, pad_e), constant_values=-1).reshape(1, e_pad)

  q_e = q_n[dst_g]                                      # [e_pad, HCp] bf16
  k_e = k_n[src_g]
  v_e = v_n[src_g]
  ea_p = jnp.pad(edge_attr, ((0, pad_e), (0, 0))).astype(BF16)
  we_p = jnp.pad(params["we"], ((0, 0), (0, HCp - HC))).astype(BF16)

  # Constant head matrices (fold per-head reductions/broadcasts into MXU ops).
  rep_val = jnp.pad(jnp.repeat(jnp.eye(H, dtype=F32), C, axis=1),
                    ((0, 0), (0, HCp - HC)))                                # [H, HCp]
  den_cols = jnp.zeros((H, HCp), F32).at[jnp.arange(H), HC + jnp.arange(H)].set(1.0)
  rep_all = rep_val + den_cols                                              # [H, HCp]
  pool = rep_val.T * jnp.float32(1.0 / math.sqrt(C))                        # [HCp, H]
  den_row = jnp.sum(den_cols, axis=0, keepdims=True)                        # [1, HCp]

  # ---- 3) edge prepass: alpha + adjusted values (once per edge) ------------
  prepass = pl.pallas_call(
      functools.partial(_edge_prepass_kernel, num_edges=E, edge_tile=edge_tile),
      out_shape=(jax.ShapeDtypeStruct((e_pad, H), F32),
                 jax.ShapeDtypeStruct((e_pad, HCp), BF16)),
      grid_spec=pltpu.PrefetchScalarGridSpec(
          num_scalar_prefetch=0,
          grid=(e_pad // edge_tile,),
          in_specs=[
              pl.BlockSpec((edge_tile, HCp), lambda i: (i, 0)),             # q_e
              pl.BlockSpec((edge_tile, HCp), lambda i: (i, 0)),             # k_e
              pl.BlockSpec((edge_tile, HCp), lambda i: (i, 0)),             # v_e
              pl.BlockSpec((edge_tile, de), lambda i: (i, 0)),              # edge_attr
              pl.BlockSpec((de, HCp), lambda i: (0, 0)),                    # we
              pl.BlockSpec((HCp, H), lambda i: (0, 0)),                     # pool
          ],
          out_specs=[
              pl.BlockSpec((edge_tile, H), lambda i: (i, 0)),               # alpha
              pl.BlockSpec((edge_tile, HCp), lambda i: (i, 0)),             # vadj
          ],
      ),
      compiler_params=pltpu.CompilerParams(dimension_semantics=("parallel",)),
  )(q_e, k_e, v_e, ea_p, we_p, pool)
  alpha, vadj = prepass

  # Global per-head max (same semantics as the reference sparse softmax).
  mx = jnp.max(alpha, axis=0, keepdims=True)                                # [1, H]

  # ---- 4) edge scatter weights (once per edge, packed + bf16) --------------
  w_ext = pl.pallas_call(
      _edge_weight_kernel,
      out_shape=jax.ShapeDtypeStruct((e_pad, HCp), BF16),
      grid_spec=pltpu.PrefetchScalarGridSpec(
          num_scalar_prefetch=0,
          grid=(e_pad // edge_tile,),
          in_specs=[
              pl.BlockSpec((edge_tile, H), lambda i: (i, 0)),               # alpha
              pl.BlockSpec((edge_tile, HCp), lambda i: (i, 0)),             # vadj
              pl.BlockSpec((1, H), lambda i: (0, 0)),                       # mx
              pl.BlockSpec((H, HCp), lambda i: (0, 0)),                     # rep_all
              pl.BlockSpec((1, HCp), lambda i: (0, 0)),                     # den_row
          ],
          out_specs=pl.BlockSpec((edge_tile, HCp), lambda i: (i, 0)),
      ),
      compiler_params=pltpu.CompilerParams(dimension_semantics=("parallel",)),
  )(alpha, vadj, mx, rep_all, den_row)

  # ---- 5) one-hot MXU scatter-sum + normalize + skip -----------------------
  agg_kernel = functools.partial(
      _aggregate_kernel, node_tile=node_tile, edge_tile=edge_tile, heads=H, hc=HC)

  out = pl.pallas_call(
      agg_kernel,
      out_shape=jax.ShapeDtypeStruct((n_pad, HCp), F32),
      grid_spec=pltpu.PrefetchScalarGridSpec(
          num_scalar_prefetch=0,
          grid=(n_pad // node_tile, e_pad // edge_tile),
          in_specs=[
              pl.BlockSpec((1, edge_tile), lambda n, e: (0, e)),            # dst ids
              pl.BlockSpec((edge_tile, HCp), lambda n, e: (e, 0)),          # w_ext
              pl.BlockSpec((H, HCp), lambda n, e: (0, 0)),                  # rep_val
              pl.BlockSpec((node_tile, HCp), lambda n, e: (n, 0)),          # skip
          ],
          out_specs=pl.BlockSpec((node_tile, HCp), lambda n, e: (n, 0)),
          scratch_shapes=[pltpu.VMEM((node_tile, HCp), F32)],               # accumulator
      ),
      compiler_params=pltpu.CompilerParams(
          dimension_semantics=("parallel", "arbitrary")),
  )(dst_m, w_ext, rep_val, skip)

  return out[:N, :HC]


# ----------------------------------------------------------------------------
# Pure-JAX reference (mirrors the PyTorch module in eval mode)
# ----------------------------------------------------------------------------
def transformer_conv_ref(x, edge_index, edge_attr, params, *, heads, out_channels):
  N, _ = x.shape
  E = edge_index.shape[1]
  H, C = heads, out_channels
  src, dst = edge_index[0], edge_index[1]
  xi, xj = x[dst], x[src]
  q = (xi @ params["wq"] + params["bq"]).reshape(E, H, C)
  k = (xj @ params["wk"] + params["bk"]).reshape(E, H, C)
  v = (xj @ params["wv"] + params["bv"]).reshape(E, H, C)
  e = (edge_attr @ params["we"]).reshape(E, H, C)
  k = k + e
  v = v + e
  alpha = (q * k).sum(-1) / math.sqrt(C)                   # [E, H]
  mx = alpha.max(axis=0, keepdims=True)
  expv = jnp.exp(alpha - mx)
  denom = jnp.zeros((N, H), jnp.float32).at[dst].add(expv)
  alpha_n = expv / (denom[dst] + 1e-16)
  msg = v * alpha_n[..., None]
  aggr = jnp.zeros((N, H, C), jnp.float32).at[dst].add(msg).reshape(N, H * C)
  return aggr + x @ params["ws"] + params["bs"]


if __name__ == "__main__":
  N = 16            # nodes
  E = 32            # edges
  IN_CH = 8         # in_channels
  EDGE_DIM = 4      # edge_dim
  HEADS = 2
  OUT_CH = 8        # out_channels (per head)
  HC = HEADS * OUT_CH

  key = jax.random.PRNGKey(0)
  keys = jax.random.split(key, 12)

  x = jax.random.normal(keys[0], (N, IN_CH), jnp.float32)
  edge_attr = jax.random.normal(keys[1], (E, EDGE_DIM), jnp.float32)
  src = jax.random.randint(keys[2], (E,), 0, N, jnp.int32)
  dst = jax.random.randint(keys[3], (E,), 0, N, jnp.int32)
  edge_index = jnp.stack([src, dst], axis=0)

  scale = 0.1
  params = {
      "wq": scale * jax.random.normal(keys[4], (IN_CH, HC), jnp.float32),
      "bq": scale * jax.random.normal(keys[5], (1, HC), jnp.float32),
      "wk": scale * jax.random.normal(keys[6], (IN_CH, HC), jnp.float32),
      "bk": scale * jax.random.normal(keys[7], (1, HC), jnp.float32),
      "wv": scale * jax.random.normal(keys[8], (IN_CH, HC), jnp.float32),
      "bv": scale * jax.random.normal(keys[9], (1, HC), jnp.float32),
      "we": scale * jax.random.normal(keys[10], (EDGE_DIM, HC), jnp.float32),
      "ws": scale * jax.random.normal(keys[11], (IN_CH, HC), jnp.float32),
      "bs": scale * jnp.ones((1, HC), jnp.float32),
  }

  out = transformer_conv(x, edge_index, edge_attr, params,
                         heads=HEADS, out_channels=OUT_CH)
  out = jax.block_until_ready(out)

  ref = transformer_conv_ref(x, edge_index, edge_attr, params,
                             heads=HEADS, out_channels=OUT_CH)
  assert out.shape == (N, HC)
  # bf16 streams / bf16 scatter matmul + approx reciprocal => looser tolerance than
  # pure-f32 (mathematically identical formulation).
  assert jnp.allclose(out, ref, atol=3e-2, rtol=3e-2), (
      float(jnp.max(jnp.abs(out - ref))))

  print("KERNEL_OK")
</pallas_src>

<mosaic_0001>
module attributes {stable_mosaic.version = 11 : i64} {
  func.func @_project_kernel(%arg0: i32, %arg1: memref<256x8xbf16, #tpu.memory_space<vmem>>, %arg2: memref<8x512xbf16, #tpu.memory_space<vmem>>, %arg3: memref<1x512xf32, #tpu.memory_space<vmem>>, %arg4: memref<256x512xf32, #tpu.memory_space<vmem>>) attributes {dimension_semantics = [#tpu.dimension_semantics<parallel>], iteration_bounds = array<i64: 1>, scalar_prefetch = 0 : i64, scratch_operands = 0 : i64, tpu.core_type = #tpu.core_type<tc>, window_params = [{transform_indices = @transform_0, window_bounds = array<i64: 256, 8>}, {pipeline_mode = #tpu.pipeline_mode<synchronous>, transform_indices = @transform_1, window_bounds = array<i64: 8, 512>}, {pipeline_mode = #tpu.pipeline_mode<synchronous>, transform_indices = @transform_2, window_bounds = array<i64: 1, 512>}, {transform_indices = @transform_3, window_bounds = array<i64: 256, 512>}]} {
    %c0 = arith.constant 0 : index
    %c0_0 = arith.constant 0 : index
    %0 = vector.load %arg1[%c0, %c0_0] : memref<256x8xbf16, #tpu.memory_space<vmem>>, vector<256x8xbf16>
    %c0_1 = arith.constant 0 : index
    %c0_2 = arith.constant 0 : index
    %1 = vector.load %arg2[%c0_1, %c0_2] : memref<8x512xbf16, #tpu.memory_space<vmem>>, vector<8x512xbf16>
    %cst = arith.constant dense<0.000000e+00> : vector<256x512xf32>
    %2 = tpu.matmul %0, %1, %cst {dimension_numbers = #tpu.dot_dimension_numbers<[1], [0], [0], [1], [0, 0, 1, 1], [], []>} : vector<256x8xbf16>, vector<8x512xbf16>, vector<256x512xf32> -> vector<256x512xf32>
    %c0_3 = arith.constant 0 : index
    %c0_4 = arith.constant 0 : index
    %3 = vector.load %arg3[%c0_3, %c0_4] : memref<1x512xf32, #tpu.memory_space<vmem>>, vector<1x512xf32>
    %4 = vector.broadcast %3 : vector<1x512xf32> to vector<256x512xf32>
    %5 = arith.addf %2, %4 : vector<256x512xf32>
    %c0_5 = arith.constant 0 : index
    %c0_6 = arith.constant 0 : index
    %6 = vector.load %arg4[%c0_5, %c0_6] : memref<256x512xf32, #tpu.memory_space<vmem>>, vector<256x512xf32>
    tpu.vector_store %arg4[%c0_5, %c0_6], %5 {strides = array<i32>} : memref<256x512xf32, #tpu.memory_space<vmem>>, vector<256x512xf32>,
    return
  }
  func.func @transform_0(%arg0: i32) -> (i32, i32) {
    %c0_i32 = arith.constant 0 : i32
    %c0_i32_0 = arith.constant 0 : i32
    return %arg0, %c0_i32 : i32, i32
  }
  func.func @transform_1(%arg0: i32) -> (i32, i32) {
    %c0_i32 = arith.constant 0 : i32
    %c0_i32_0 = arith.constant 0 : i32
    %c0_i32_1 = arith.constant 0 : i32
    return %c0_i32, %c0_i32_0 : i32, i32
  }
  func.func @transform_2(%arg0: i32) -> (i32, i32) {
    %c0_i32 = arith.constant 0 : i32
    %c0_i32_0 = arith.constant 0 : i32
    %c0_i32_1 = arith.constant 0 : i32
    return %c0_i32, %c0_i32_0 : i32, i32
  }
  func.func @transform_3(%arg0: i32) -> (i32, i32) {
    %c0_i32 = arith.constant 0 : i32
    %c0_i32_0 = arith.constant 0 : i32
    return %arg0, %c0_i32 : i32, i32
  }
}

</mosaic_0001>

<llo_original>
// kernel: tpu_custom_call.1
$region0: #{tpu_custom_call.1}
  #allocation0 [shape = 'u32[]', space=smem, size = 0x4, offset = 0x4, fixed_abs, tag = 'smem constant byte address 0x4 - core index']
  #allocation1 [shape = 'u32[144,128]{1,0:T(1,128)}', space=vmem, size = 0x12000, scoped, tag = 'internal scratch']
  %s0 = inlined_call_operand.vmem [shape: bf16[256,8], index: 0, kind: input, shape index: {}]
  %s1 = inlined_call_operand.vmem [shape: bf16[8,512], index: 1, kind: input, shape index: {}]
  %s2 = inlined_call_operand.vmem [shape: f32[1,512], index: 2, kind: input, shape index: {}]
  %s3 = inlined_call_operand.hbm [shape: f32[256,512], index: 3, kind: output, shape index: {}]
  %s4 = sld [smem:[#allocation0]]
  $region22: #{tpu_custom_call.1} parent=0
    _
  %s6 = ssub.s32 1, %s4
  %s7 = scalar_select 0, %s6, %s4
  $region1: #{tpu_custom_call.1} parent=0
    #allocation2 [shape = 'u8[524288]{0}', space=vmem, size = 0x80000, scoped, tag = 'output window, operand 0, single buffered']
    #allocation3 [shape = 's32[1]{0}', space=sflag, size = 0x4, scoped, tag = 'scoped memory for tpu_custom_call.1']
    %8 = vsyncpa [#allocation3], 0
    // Predicated region
    $region2: #{tpu_custom_call.1} parent=1 // pred_check
      _
    $region3: #{tpu_custom_call.1} parent=1 // pred_check_branch
      %10 = sbr.rel (0) target = $region5
    $region4: #{tpu_custom_call.1} parent=1 // pred_region
      _
    $region5: #{tpu_custom_call.1} parent=1 // pred_fallthru
      _
    // Predicated region
    $region6: #{tpu_custom_call.1} parent=1 // pred_check
      _
    $region7: #{tpu_custom_call.1} parent=1 // pred_check_branch
      %12 = sbr.rel (0) target = $region9
    $region8: #{tpu_custom_call.1} parent=1 // pred_region
      _
    $region9: #{tpu_custom_call.1} parent=1 // pred_fallthru
      _
    // Predicated region
    $region10: #{tpu_custom_call.1} parent=1 // pred_check
      _
    $region11: #{tpu_custom_call.1} parent=1 // pred_check_branch
      %14 = sbr.rel (0) target = $region13
    $region12: #{tpu_custom_call.1} parent=1 // pred_region
      _
    $region13: #{tpu_custom_call.1} parent=1 // pred_fallthru
      _
    %v16 = vld [vmem:[%s0] sm:$0xf]
    %v17 = vld [vmem:[%s0 + $0x4] sm:$0xf]
    %v18 = vld [vmem:[%s0 + $0x8] sm:$0xf]
    %v19 = vld [vmem:[%s0 + $0xc] sm:$0xf]
    %v20 = vld [vmem:[%s0 + $0x10] sm:$0xf]
    %v21 = vld [vmem:[%s0 + $0x14] sm:$0xf]
    %v22 = vld [vmem:[%s0 + $0x18] sm:$0xf]
    %v23 = vld [vmem:[%s0 + $0x1c] sm:$0xf]
    %v24 = vld [vmem:[%s0 + $0x20] sm:$0xf]
    %v25 = vld [vmem:[%s0 + $0x24] sm:$0xf]
    %v26 = vld [vmem:[%s0 + $0x28] sm:$0xf]
    %v27 = vld [vmem:[%s0 + $0x2c] sm:$0xf]
    %v28 = vld [vmem:[%s0 + $0x30] sm:$0xf]
    %v29 = vld [vmem:[%s0 + $0x34] sm:$0xf]
    %v30 = vld [vmem:[%s0 + $0x38] sm:$0xf]
    %v31 = vld [vmem:[%s0 + $0x3c] sm:$0xf]
    %v32 = vld [vmem:[%s0 + $0x40] sm:$0xf]
    %v33 = vld [vmem:[%s0 + $0x44] sm:$0xf]
    %v34 = vld [vmem:[%s0 + $0x48] sm:$0xf]
    %v35 = vld [vmem:[%s0 + $0x4c] sm:$0xf]
    %v36 = vld [vmem:[%s0 + $0x50] sm:$0xf]
    %v37 = vld [vmem:[%s0 + $0x54] sm:$0xf]
    %v38 = vld [vmem:[%s0 + $0x58] sm:$0xf]
    %v39 = vld [vmem:[%s0 + $0x5c] sm:$0xf]
    %v40 = vld [vmem:[%s0 + $0x60] sm:$0xf]
    %v41 = vld [vmem:[%s0 + $0x64] sm:$0xf]
    %v42 = vld [vmem:[%s0 + $0x68] sm:$0xf]
    %v43 = vld [vmem:[%s0 + $0x6c] sm:$0xf]
    %v44 = vld [vmem:[%s0 + $0x70] sm:$0xf]
    %v45 = vld [vmem:[%s0 + $0x74] sm:$0xf]
    %v46 = vld [vmem:[%s0 + $0x78] sm:$0xf]
    %v47 = vld [vmem:[%s0 + $0x7c] sm:$0xf]
    %v48 = vld [vmem:[%s1] sm:$0xff]
    %v49 = vld [vmem:[%s1 + $0x8] sm:$0xff]
    %v50 = vld [vmem:[%s2] sm:$0xf]
    %v52 = vlaneseq
    %v53 = vshrl.u32 %v52, 7
    %v54 = vsub.s32 0, %v53
    %v55 = vrot.slane %v50, %v54
    %v56 = vlaneseq
    %v57 = vshrl.u32 %v56, 7
    %v58 = vsub.s32 1, %v57
    %v59 = vrot.slane %v50, %v58
    %v60 = vlaneseq
    %v61 = vshrl.u32 %v60, 7
    %v62 = vsub.s32 2, %v61
    %v63 = vrot.slane %v50, %v62
    %v64 = vlaneseq
    %v65 = vshrl.u32 %v64, 7
    %v66 = vsub.s32 3, %v65
    %v67 = vrot.slane %v50, %v66
    %v104 = vunpack.c.l.b16 %v16
    %v105 = vunpack.c.l.b16 %v17
    %v106 = vunpack.c.l.b16 %v18
    %v107 = vunpack.c.l.b16 %v19
    %v108 = vunpack.c.l.b16 %v20
    %v109 = vunpack.c.l.b16 %v21
    %v110 = vunpack.c.l.b16 %v22
    %v111 = vunpack.c.l.b16 %v23
    %v112 = vunpack.c.l.b16 %v24
    %v113 = vunpack.c.l.b16 %v25
    %v114 = vunpack.c.l.b16 %v26
    %v115 = vunpack.c.l.b16 %v27
    %v116 = vunpack.c.l.b16 %v28
    %v117 = vunpack.c.l.b16 %v29
    %v118 = vunpack.c.l.b16 %v30
    %v119 = vunpack.c.l.b16 %v31
    %v120 = vunpack.c.l.b16 %v32
    %v121 = vunpack.c.l.b16 %v33
    %v122 = vunpack.c.l.b16 %v34
    %v123 = vunpack.c.l.b16 %v35
    %v124 = vunpack.c.l.b16 %v36
    %v125 = vunpack.c.l.b16 %v37
    %v126 = vunpack.c.l.b16 %v38
    %v127 = vunpack.c.l.b16 %v39
    %v128 = vunpack.c.l.b16 %v40
    %v129 = vunpack.c.l.b16 %v41
    %v130 = vunpack.c.l.b16 %v42
    %v131 = vunpack.c.l.b16 %v43
    %v132 = vunpack.c.l.b16 %v44
    %v133 = vunpack.c.l.b16 %v45
    %v134 = vunpack.c.l.b16 %v46
    %v135 = vunpack.c.l.b16 %v47
    %v136 = vpack.c.b16 %v105, %v104
    %v137 = vpack.c.b16 %v107, %v106
    %v138 = vpack.c.b16 %v109, %v108
    %v139 = vpack.c.b16 %v111, %v110
    %v140 = vpack.c.b16 %v113, %v112
    %v141 = vpack.c.b16 %v115, %v114
    %v142 = vpack.c.b16 %v117, %v116
    %v143 = vpack.c.b16 %v119, %v118
    %v144 = vpack.c.b16 %v121, %v120
    %v145 = vpack.c.b16 %v123, %v122
    %v146 = vpack.c.b16 %v125, %v124
    %v147 = vpack.c.b16 %v127, %v126
    %v148 = vpack.c.b16 %v129, %v128
    %v149 = vpack.c.b16 %v131, %v130
    %v150 = vpack.c.b16 %v133, %v132
    %v151 = vpack.c.b16 %v135, %v134
    %v154 = vunpack.c.l.b16 %v48
    %v155 = vunpack.c.h.b16 %v48
    %v156 = vunpack.c.l.b16 %v49
    %v157 = vunpack.c.h.b16 %v49
    %v158 = vpack.c.b16 %v154, %v154
    %v159 = vpack.c.b16 %v155, %v155
    %v160 = vpack.c.b16 %v156, %v156
    %v161 = vpack.c.b16 %v157, %v157
    %vm162 = vcmask 64512
    %v164 = vsel %vm162, %v136, 0
    %v167 = vsel %vm162, %v137, 0
    %v170 = vsel %vm162, %v138, 0
    %v173 = vsel %vm162, %v139, 0
    %v176 = vsel %vm162, %v140, 0
    %v179 = vsel %vm162, %v141, 0
    %v182 = vsel %vm162, %v142, 0
    %v185 = vsel %vm162, %v143, 0
    %v188 = vsel %vm162, %v144, 0
    %v191 = vsel %vm162, %v145, 0
    %v194 = vsel %vm162, %v146, 0
    %v197 = vsel %vm162, %v147, 0
    %v200 = vsel %vm162, %v148, 0
    %v203 = vsel %vm162, %v149, 0
    %v206 = vsel %vm162, %v150, 0
    %v209 = vsel %vm162, %v151, 0
    %vm211 = vcmask 1043456
    %v213 = vsel %vm211, %v158, 0
    %v216 = vsel %vm211, %v159, 0
    %v219 = vsel %vm211, %v160, 0
    %v222 = vsel %vm211, %v161, 0
    %224 = vmatprep.subr.bf16.mxu0 %v216
    %225 = vmatpush1.bf16.msra.mxu0 %v213
    %226 = vmatprep.subr.bf16.mxu0 0
    %227 = vmatpush1.bf16.msra.mxu0 0
    %228 = vmatprep.subr.bf16.mxu0 0
    %229 = vmatpush1.bf16.msra.mxu0 0
    %230 = vmatprep.subr.bf16.mxu0 0
    %231 = vmatpush1.bf16.msra.mxu0 0
    %232 = vmatprep.subr.bf16.mxu0 0
    %233 = vmatpush1.bf16.msra.mxu0 0
    %234 = vmatprep.subr.bf16.mxu0 0
    %235 = vmatpush1.bf16.msra.mxu0 0
    %236 = vmatprep.subr.bf16.mxu0 0
    %237 = vmatpush1.bf16.msra.mxu0 0
    %238 = vmatprep.subr.bf16.mxu0 0
    %239 = vmatpush1.bf16.msra.mxu0 0
    %240 = vmatprep.subr.bf16.mxu0 0
    %241 = vmatpush1.bf16.msra.mxu0 0
    %242 = vmatprep.subr.bf16.mxu0 0
    %243 = vmatpush1.bf16.msra.mxu0 0
    %244 = vmatprep.subr.bf16.mxu0 0
    %245 = vmatpush1.bf16.msra.mxu0 0
    %246 = vmatprep.subr.bf16.mxu0 0
    %247 = vmatpush1.bf16.msra.mxu0 0
    %248 = vmatprep.subr.bf16.mxu0 0
    %249 = vmatpush1.bf16.msra.mxu0 0
    %250 = vmatprep.subr.bf16.mxu0 0
    %251 = vmatpush1.bf16.msra.mxu0 0
    %252 = vmatprep.subr.bf16.mxu0 0
    %253 = vmatpush1.bf16.msra.mxu0 0
    %254 = vmatprep.subr.bf16.mxu0 0
    %255 = vmatpush1.bf16.msra.mxu0 0
    %256 = vmatprep.mubr.bf16.mxu0 0
    %257 = vmatmul.mubr.bf16.gmra.mrb[0].mxu0 %v164
    %v258 = vpop.f32.mrb[0].mxu0
    %v259 = vadd.f32 %v55, %v258
    %v260 = vpop.f32.mrb[0].mxu0
    %v261 = vadd.f32 %v59, %v260
    %v262 = vpop.f32.mrb[0].mxu0
    %v263 = vadd.f32 %v55, %v262
    %v264 = vpop.f32.mrb[0].mxu0
    %v265 = vadd.f32 %v59, %v264
    %266 = vmatprep.mubr.bf16.mxu0 0
    %267 = vmatmul.mubr.bf16.gmra.mrb[0].mxu0 %v167
    %v268 = vpop.f32.mrb[0].mxu0
    %v269 = vadd.f32 %v55, %v268
    %v270 = vpop.f32.mrb[0].mxu0
    %v271 = vadd.f32 %v59, %v270
    %v272 = vpop.f32.mrb[0].mxu0
    %v273 = vadd.f32 %v55, %v272
    %v274 = vpop.f32.mrb[0].mxu0
    %v275 = vadd.f32 %v59, %v274
    %276 = vmatprep.mubr.bf16.mxu0 0
    %277 = vmatmul.mubr.bf16.gmra.mrb[0].mxu0 %v170
    %v278 = vpop.f32.mrb[0].mxu0
    %v279 = vadd.f32 %v55, %v278
    %v280 = vpop.f32.mrb[0].mxu0
    %v281 = vadd.f32 %v59, %v280
    %v282 = vpop.f32.mrb[0].mxu0
    %v283 = vadd.f32 %v55, %v282
    %v284 = vpop.f32.mrb[0].mxu0
    %v285 = vadd.f32 %v59, %v284
    %286 = vmatprep.mubr.bf16.mxu0 0
    %287 = vmatmul.mubr.bf16.gmra.mrb[0].mxu0 %v173
    %v288 = vpop.f32.mrb[0].mxu0
    %v289 = vadd.f32 %v55, %v288
    %v290 = vpop.f32.mrb[0].mxu0
    %v291 = vadd.f32 %v59, %v290
    %v292 = vpop.f32.mrb[0].mxu0
    %v293 = vadd.f32 %v55, %v292
    %v294 = vpop.f32.mrb[0].mxu0
    %v295 = vadd.f32 %v59, %v294
    %296 = vmatprep.mubr.bf16.mxu0 0
    %297 = vmatmul.mubr.bf16.gmra.mrb[0].mxu0 %v176
    %v298 = vpop.f32.mrb[0].mxu0
    %v299 = vadd.f32 %v55, %v298
    %v300 = vpop.f32.mrb[0].mxu0
    %v301 = vadd.f32 %v59, %v300
    %v302 = vpop.f32.mrb[0].mxu0
    %v303 = vadd.f32 %v55, %v302
    %v304 = vpop.f32.mrb[0].mxu0
    %v305 = vadd.f32 %v59, %v304
    %306 = vmatprep.mubr.bf16.mxu0 0
    %307 = vmatmul.mubr.bf16.gmra.mrb[0].mxu0 %v179
    %v308 = vpop.f32.mrb[0].mxu0
    %v309 = vadd.f32 %v55, %v308
    %v310 = vpop.f32.mrb[0].mxu0
    %v311 = vadd.f32 %v59, %v310
    %v312 = vpop.f32.mrb[0].mxu0
    %v313 = vadd.f32 %v55, %v312
    %v314 = vpop.f32.mrb[0].mxu0
    %v315 = vadd.f32 %v59, %v314
    %316 = vmatprep.mubr.bf16.mxu0 0
    %317 = vmatmul.mubr.bf16.gmra.mrb[0].mxu0 %v182
    %v318 = vpop.f32.mrb[0].mxu0
    %v319 = vadd.f32 %v55, %v318
    %v320 = vpop.f32.mrb[0].mxu0
    %v321 = vadd.f32 %v59, %v320
    %v322 = vpop.f32.mrb[0].mxu0
    %v323 = vadd.f32 %v55, %v322
    %v324 = vpop.f32.mrb[0].mxu0
    %v325 = vadd.f32 %v59, %v324
    %326 = vmatprep.mubr.bf16.mxu0 0
    %327 = vmatmul.mubr.bf16.gmra.mrb[0].mxu0 %v185
    %v328 = vpop.f32.mrb[0].mxu0
    %v329 = vadd.f32 %v55, %v328
    %v330 = vpop.f32.mrb[0].mxu0
    %v331 = vadd.f32 %v59, %v330
    %v332 = vpop.f32.mrb[0].mxu0
    %v333 = vadd.f32 %v55, %v332
    %v334 = vpop.f32.mrb[0].mxu0
    %v335 = vadd.f32 %v59, %v334
    %336 = vmatprep.mubr.bf16.mxu0 0
    %337 = vmatmul.mubr.bf16.gmra.mrb[0].mxu0 %v188
    %v338 = vpop.f32.mrb[0].mxu0
    %v339 = vadd.f32 %v55, %v338
    %v340 = vpop.f32.mrb[0].mxu0
    %v341 = vadd.f32 %v59, %v340
    %v342 = vpop.f32.mrb[0].mxu0
    %v343 = vadd.f32 %v55, %v342
    %v344 = vpop.f32.mrb[0].mxu0
    %v345 = vadd.f32 %v59, %v344
    %346 = vmatprep.mubr.bf16.mxu0 0
    %347 = vmatmul.mubr.bf16.gmra.mrb[0].mxu0 %v191
    %v348 = vpop.f32.mrb[0].mxu0
    %v349 = vadd.f32 %v55, %v348
    %v350 = vpop.f32.mrb[0].mxu0
    %v351 = vadd.f32 %v59, %v350
    %v352 = vpop.f32.mrb[0].mxu0
    %v353 = vadd.f32 %v55, %v352
    %v354 = vpop.f32.mrb[0].mxu0
    %v355 = vadd.f32 %v59, %v354
    %356 = vmatprep.mubr.bf16.mxu0 0
    %357 = vmatmul.mubr.bf16.gmra.mrb[0].mxu0 %v194
    %v358 = vpop.f32.mrb[0].mxu0
    %v359 = vadd.f32 %v55, %v358
    %v360 = vpop.f32.mrb[0].mxu0
    %v361 = vadd.f32 %v59, %v360
    %v362 = vpop.f32.mrb[0].mxu0
    %v363 = vadd.f32 %v55, %v362
    %v364 = vpop.f32.mrb[0].mxu0
    %v365 = vadd.f32 %v59, %v364
    %366 = vmatprep.mubr.bf16.mxu0 0
    %367 = vmatmul.mubr.bf16.gmra.mrb[0].mxu0 %v197
    %v368 = vpop.f32.mrb[0].mxu0
    %v369 = vadd.f32 %v55, %v368
    %v370 = vpop.f32.mrb[0].mxu0
    %v371 = vadd.f32 %v59, %v370
    %v372 = vpop.f32.mrb[0].mxu0
    %v373 = vadd.f32 %v55, %v372
    %v374 = vpop.f32.mrb[0].mxu0
    %v375 = vadd.f32 %v59, %v374
    %376 = vmatprep.mubr.bf16.mxu0 0
    %377 = vmatmul.mubr.bf16.gmra.mrb[0].mxu0 %v200
    %v378 = vpop.f32.mrb[0].mxu0
    %v379 = vadd.f32 %v55, %v378
    %v380 = vpop.f32.mrb[0].mxu0
    %v381 = vadd.f32 %v59, %v380
    %v382 = vpop.f32.mrb[0].mxu0
    %v383 = vadd.f32 %v55, %v382
    %v384 = vpop.f32.mrb[0].mxu0
    %v385 = vadd.f32 %v59, %v384
    %386 = vmatprep.mubr.bf16.mxu0 0
    %387 = vmatmul.mubr.bf16.gmra.mrb[0].mxu0 %v203
    %v388 = vpop.f32.mrb[0].mxu0
    %v389 = vadd.f32 %v55, %v388
    %v390 = vpop.f32.mrb[0].mxu0
    %v391 = vadd.f32 %v59, %v390
    %v392 = vpop.f32.mrb[0].mxu0
    %v393 = vadd.f32 %v55, %v392
    %v394 = vpop.f32.mrb[0].mxu0
    %v395 = vadd.f32 %v59, %v394
    %396 = vmatprep.mubr.bf16.mxu0 0
    %397 = vmatmul.mubr.bf16.gmra.mrb[0].mxu0 %v206
    %v398 = vpop.f32.mrb[0].mxu0
    %v399 = vadd.f32 %v55, %v398
    %v400 = vpop.f32.mrb[0].mxu0
    %v401 = vadd.f32 %v59, %v400
    %v402 = vpop.f32.mrb[0].mxu0
    %v403 = vadd.f32 %v55, %v402
    %v404 = vpop.f32.mrb[0].mxu0
    %v405 = vadd.f32 %v59, %v404
    %406 = vmatprep.mubr.bf16.mxu0 0
    %407 = vmatmul.mubr.bf16.gmra.mrb[0].mxu0 %v209
    %v408 = vpop.f32.mrb[0].mxu0
    %v409 = vadd.f32 %v55, %v408
    %v410 = vpop.f32.mrb[0].mxu0
    %v411 = vadd.f32 %v59, %v410
    %v412 = vpop.f32.mrb[0].mxu0
    %v413 = vadd.f32 %v55, %v412
    %v414 = vpop.f32.mrb[0].mxu0
    %v415 = vadd.f32 %v59, %v414
    %416 = vdwg.mxu0
    %417 = vmatprep.subr.bf16.mxu0 %v222
    %418 = vmatpush1.bf16.msra.mxu0 %v219
    %419 = vmatprep.subr.bf16.mxu0 0
    %420 = vmatpush1.bf16.msra.mxu0 0
    %421 = vmatprep.subr.bf16.mxu0 0
    %422 = vmatpush1.bf16.msra.mxu0 0
    %423 = vmatprep.subr.bf16.mxu0 0
    %424 = vmatpush1.bf16.msra.mxu0 0
    %425 = vmatprep.subr.bf16.mxu0 0
    %426 = vmatpush1.bf16.msra.mxu0 0
    %427 = vmatprep.subr.bf16.mxu0 0
    %428 = vmatpush1.bf16.msra.mxu0 0
    %429 = vmatprep.subr.bf16.mxu0 0
    %430 = vmatpush1.bf16.msra.mxu0 0
    %431 = vmatprep.subr.bf16.mxu0 0
    %432 = vmatpush1.bf16.msra.mxu0 0
    %433 = vmatprep.subr.bf16.mxu0 0
    %434 = vmatpush1.bf16.msra.mxu0 0
    %435 = vmatprep.subr.bf16.mxu0 0
    %436 = vmatpush1.bf16.msra.mxu0 0
    %437 = vmatprep.subr.bf16.mxu0 0
    %438 = vmatpush1.bf16.msra.mxu0 0
    %439 = vmatprep.subr.bf16.mxu0 0
    %440 = vmatpush1.bf16.msra.mxu0 0
    %441 = vmatprep.subr.bf16.mxu0 0
    %442 = vmatpush1.bf16.msra.mxu0 0
    %443 = vmatprep.subr.bf16.mxu0 0
    %444 = vmatpush1.bf16.msra.mxu0 0
    %445 = vmatprep.subr.bf16.mxu0 0
    %446 = vmatpush1.bf16.msra.mxu0 0
    %447 = vmatprep.subr.bf16.mxu0 0
    %448 = vmatpush1.bf16.msra.mxu0 0
    %449 = vmatprep.mubr.bf16.mxu0 0
    %450 = vmatmul.mubr.bf16.gmra.mrb[0].mxu0 %v164
    %v451 = vpop.f32.mrb[0].mxu0
    %v452 = vadd.f32 %v63, %v451
    %v453 = vpop.f32.mrb[0].mxu0
    %v454 = vadd.f32 %v67, %v453
    %v455 = vpop.f32.mrb[0].mxu0
    %v456 = vadd.f32 %v63, %v455
    %v457 = vpop.f32.mrb[0].mxu0
    %v458 = vadd.f32 %v67, %v457
    %459 = vmatprep.mubr.bf16.mxu0 0
    %460 = vmatmul.mubr.bf16.gmra.mrb[0].mxu0 %v167
    %v461 = vpop.f32.mrb[0].mxu0
    %v462 = vadd.f32 %v63, %v461
    %v463 = vpop.f32.mrb[0].mxu0
    %v464 = vadd.f32 %v67, %v463
    %v465 = vpop.f32.mrb[0].mxu0
    %v466 = vadd.f32 %v63, %v465
    %v467 = vpop.f32.mrb[0].mxu0
    %v468 = vadd.f32 %v67, %v467
    %469 = vmatprep.mubr.bf16.mxu0 0
    %470 = vmatmul.mubr.bf16.gmra.mrb[0].mxu0 %v170
    %v471 = vpop.f32.mrb[0].mxu0
    %v472 = vadd.f32 %v63, %v471
    %v473 = vpop.f32.mrb[0].mxu0
    %v474 = vadd.f32 %v67, %v473
    %v475 = vpop.f32.mrb[0].mxu0
    %v476 = vadd.f32 %v63, %v475
    %v477 = vpop.f32.mrb[0].mxu0
    %v478 = vadd.f32 %v67, %v477
    %479 = vmatprep.mubr.bf16.mxu0 0
    %480 = vmatmul.mubr.bf16.gmra.mrb[0].mxu0 %v173
    %v481 = vpop.f32.mrb[0].mxu0
    %v482 = vadd.f32 %v63, %v481
    %v483 = vpop.f32.mrb[0].mxu0
    %v484 = vadd.f32 %v67, %v483
    %v485 = vpop.f32.mrb[0].mxu0
    %v486 = vadd.f32 %v63, %v485
    %v487 = vpop.f32.mrb[0].mxu0
    %v488 = vadd.f32 %v67, %v487
    %489 = vmatprep.mubr.bf16.mxu0 0
    %490 = vmatmul.mubr.bf16.gmra.mrb[0].mxu0 %v176
    %v491 = vpop.f32.mrb[0].mxu0
    %v492 = vadd.f32 %v63, %v491
    %v493 = vpop.f32.mrb[0].mxu0
    %v494 = vadd.f32 %v67, %v493
    %v495 = vpop.f32.mrb[0].mxu0
    %v496 = vadd.f32 %v63, %v495
    %v497 = vpop.f32.mrb[0].mxu0
    %v498 = vadd.f32 %v67, %v497
    %499 = vmatprep.mubr.bf16.mxu0 0
    %500 = vmatmul.mubr.bf16.gmra.mrb[0].mxu0 %v179
    %v501 = vpop.f32.mrb[0].mxu0
    %v502 = vadd.f32 %v63, %v501
    %v503 = vpop.f32.mrb[0].mxu0
    %v504 = vadd.f32 %v67, %v503
    %v505 = vpop.f32.mrb[0].mxu0
    %v506 = vadd.f32 %v63, %v505
    %v507 = vpop.f32.mrb[0].mxu0
    %v508 = vadd.f32 %v67, %v507
    %509 = vmatprep.mubr.bf16.mxu0 0
    %510 = vmatmul.mubr.bf16.gmra.mrb[0].mxu0 %v182
    %v511 = vpop.f32.mrb[0].mxu0
    %v512 = vadd.f32 %v63, %v511
    %v513 = vpop.f32.mrb[0].mxu0
    %v514 = vadd.f32 %v67, %v513
    %v515 = vpop.f32.mrb[0].mxu0
    %v516 = vadd.f32 %v63, %v515
    %v517 = vpop.f32.mrb[0].mxu0
    %v518 = vadd.f32 %v67, %v517
    %519 = vmatprep.mubr.bf16.mxu0 0
    %520 = vmatmul.mubr.bf16.gmra.mrb[0].mxu0 %v185
    %v521 = vpop.f32.mrb[0].mxu0
    %v522 = vadd.f32 %v63, %v521
    %v523 = vpop.f32.mrb[0].mxu0
    %v524 = vadd.f32 %v67, %v523
    %v525 = vpop.f32.mrb[0].mxu0
    %v526 = vadd.f32 %v63, %v525
    %v527 = vpop.f32.mrb[0].mxu0
    %v528 = vadd.f32 %v67, %v527
    %529 = vmatprep.mubr.bf16.mxu0 0
    %530 = vmatmul.mubr.bf16.gmra.mrb[0].mxu0 %v188
    %v531 = vpop.f32.mrb[0].mxu0
    %v532 = vadd.f32 %v63, %v531
    %v533 = vpop.f32.mrb[0].mxu0
    %v534 = vadd.f32 %v67, %v533
    %v535 = vpop.f32.mrb[0].mxu0
    %v536 = vadd.f32 %v63, %v535
    %v537 = vpop.f32.mrb[0].mxu0
    %v538 = vadd.f32 %v67, %v537
    %539 = vmatprep.mubr.bf16.mxu0 0
    %540 = vmatmul.mubr.bf16.gmra.mrb[0].mxu0 %v191
    %v541 = vpop.f32.mrb[0].mxu0
    %v542 = vadd.f32 %v63, %v541
    %v543 = vpop.f32.mrb[0].mxu0
    %v544 = vadd.f32 %v67, %v543
    %v545 = vpop.f32.mrb[0].mxu0
    %v546 = vadd.f32 %v63, %v545
    %v547 = vpop.f32.mrb[0].mxu0
    %v548 = vadd.f32 %v67, %v547
    %549 = vmatprep.mubr.bf16.mxu0 0
    %550 = vmatmul.mubr.bf16.gmra.mrb[0].mxu0 %v194
    %v551 = vpop.f32.mrb[0].mxu0
    %v552 = vadd.f32 %v63, %v551
    %v553 = vpop.f32.mrb[0].mxu0
    %v554 = vadd.f32 %v67, %v553
    %v555 = vpop.f32.mrb[0].mxu0
    %v556 = vadd.f32 %v63, %v555
    %v557 = vpop.f32.mrb[0].mxu0
    %v558 = vadd.f32 %v67, %v557
    %559 = vmatprep.mubr.bf16.mxu0 0
    %560 = vmatmul.mubr.bf16.gmra.mrb[0].mxu0 %v197
    %v561 = vpop.f32.mrb[0].mxu0
    %v562 = vadd.f32 %v63, %v561
    %v563 = vpop.f32.mrb[0].mxu0
    %v564 = vadd.f32 %v67, %v563
    %v565 = vpop.f32.mrb[0].mxu0
    %v566 = vadd.f32 %v63, %v565
    %v567 = vpop.f32.mrb[0].mxu0
    %v568 = vadd.f32 %v67, %v567
    %569 = vmatprep.mubr.bf16.mxu0 0
    %570 = vmatmul.mubr.bf16.gmra.mrb[0].mxu0 %v200
    %v571 = vpop.f32.mrb[0].mxu0
    %v572 = vadd.f32 %v63, %v571
    %v573 = vpop.f32.mrb[0].mxu0
    %v574 = vadd.f32 %v67, %v573
    %v575 = vpop.f32.mrb[0].mxu0
    %v576 = vadd.f32 %v63, %v575
    %v577 = vpop.f32.mrb[0].mxu0
    %v578 = vadd.f32 %v67, %v577
    %579 = vmatprep.mubr.bf16.mxu0 0
    %580 = vmatmul.mubr.bf16.gmra.mrb[0].mxu0 %v203
    %v581 = vpop.f32.mrb[0].mxu0
    %v582 = vadd.f32 %v63, %v581
    %v583 = vpop.f32.mrb[0].mxu0
    %v584 = vadd.f32 %v67, %v583
    %v585 = vpop.f32.mrb[0].mxu0
    %v586 = vadd.f32 %v63, %v585
    %v587 = vpop.f32.mrb[0].mxu0
    %v588 = vadd.f32 %v67, %v587
    %589 = vmatprep.mubr.bf16.mxu0 0
    %590 = vmatmul.mubr.bf16.gmra.mrb[0].mxu0 %v206
    %v591 = vpop.f32.mrb[0].mxu0
    %v592 = vadd.f32 %v63, %v591
    %v593 = vpop.f32.mrb[0].mxu0
    %v594 = vadd.f32 %v67, %v593
    %v595 = vpop.f32.mrb[0].mxu0
    %v596 = vadd.f32 %v63, %v595
    %v597 = vpop.f32.mrb[0].mxu0
    %v598 = vadd.f32 %v67, %v597
    %599 = vmatprep.mubr.bf16.mxu0 0
    %600 = vmatmul.mubr.bf16.gmra.mrb[0].mxu0 %v209
    %v601 = vpop.f32.mrb[0].mxu0
    %v602 = vadd.f32 %v63, %v601
    %v603 = vpop.f32.mrb[0].mxu0
    %v604 = vadd.f32 %v67, %v603
    %v605 = vpop.f32.mrb[0].mxu0
    %v606 = vadd.f32 %v63, %v605
    %v607 = vpop.f32.mrb[0].mxu0
    %v608 = vadd.f32 %v67, %v607
    %609 = vdwg.mxu0
    %610 = vst [vmem:[#allocation2] sm:$0xff] %v259
    %611 = vst [vmem:[#allocation2 + $0x8] sm:$0xff] %v261
    %612 = vst [vmem:[#allocation2 + $0x10] sm:$0xff] %v452
    %613 = vst [vmem:[#allocation2 + $0x18] sm:$0xff] %v454
    %614 = vst [vmem:[#allocation2 + $0x20] sm:$0xff] %v263
    %615 = vst [vmem:[#allocation2 + $0x28] sm:$0xff] %v265
    %616 = vst [vmem:[#allocation2 + $0x30] sm:$0xff] %v456
    %617 = vst [vmem:[#allocation2 + $0x38] sm:$0xff] %v458
    %618 = vst [vmem:[#allocation2 + $0x40] sm:$0xff] %v269
    %619 = vst [vmem:[#allocation2 + $0x48] sm:$0xff] %v271
    %620 = vst [vmem:[#allocation2 + $0x50] sm:$0xff] %v462
    %621 = vst [vmem:[#allocation2 + $0x58] sm:$0xff] %v464
    %622 = vst [vmem:[#allocation2 + $0x60] sm:$0xff] %v273
    %623 = vst [vmem:[#allocation2 + $0x68] sm:$0xff] %v275
    %624 = vst [vmem:[#allocation2 + $0x70] sm:$0xff] %v466
    %625 = vst [vmem:[#allocation2 + $0x78] sm:$0xff] %v468
    %626 = vst [vmem:[#allocation2 + $0x80] sm:$0xff] %v279
    %627 = vst [vmem:[#allocation2 + $0x88] sm:$0xff] %v281
    %628 = vst [vmem:[#allocation2 + $0x90] sm:$0xff] %v472
    %629 = vst [vmem:[#allocation2 + $0x98] sm:$0xff] %v474
    %630 = vst [vmem:[#allocation2 + $0xa0] sm:$0xff] %v283
    %631 = vst [vmem:[#allocation2 + $0xa8] sm:$0xff] %v285
    %632 = vst [vmem:[#allocation2 + $0xb0] sm:$0xff] %v476
    %633 = vst [vmem:[#allocation2 + $0xb8] sm:$0xff] %v478
    %634 = vst [vmem:[#allocation2 + $0xc0] sm:$0xff] %v289
    %635 = vst [vmem:[#allocation2 + $0xc8] sm:$0xff] %v291
    %636 = vst [vmem:[#allocation2 + $0xd0] sm:$0xff] %v482
    %637 = vst [vmem:[#allocation2 + $0xd8] sm:$0xff] %v484
    %638 = vst [vmem:[#allocation2 + $0xe0] sm:$0xff] %v293
    %639 = vst [vmem:[#allocation2 + $0xe8] sm:$0xff] %v295
    %640 = vst [vmem:[#allocation2 + $0xf0] sm:$0xff] %v486
    %641 = vst [vmem:[#allocation2 + $0xf8] sm:$0xff] %v488
    %642 = vst [vmem:[#allocation2 + $0x100] sm:$0xff] %v299
    %643 = vst [vmem:[#allocation2 + $0x108] sm:$0xff] %v301
    %644 = vst [vmem:[#allocation2 + $0x110] sm:$0xff] %v492
    %645 = vst [vmem:[#allocation2 + $0x118] sm:$0xff] %v494
    %646 = vst [vmem:[#allocation2 + $0x120] sm:$0xff] %v303
    %647 = vst [vmem:[#allocation2 + $0x128] sm:$0xff] %v305
    %648 = vst [vmem:[#allocation2 + $0x130] sm:$0xff] %v496
    %649 = vst [vmem:[#allocation2 + $0x138] sm:$0xff] %v498
    %650 = vst [vmem:[#allocation2 + $0x140] sm:$0xff] %v309
    %651 = vst [vmem:[#allocation2 + $0x148] sm:$0xff] %v311
    %652 = vst [vmem:[#allocation2 + $0x150] sm:$0xff] %v502
    %653 = vst [vmem:[#allocation2 + $0x158] sm:$0xff] %v504
    %654 = vst [vmem:[#allocation2 + $0x160] sm:$0xff] %v313
    %655 = vst [vmem:[#allocation2 + $0x168] sm:$0xff] %v315
    %656 = vst [vmem:[#allocation2 + $0x170] sm:$0xff] %v506
    %657 = vst [vmem:[#allocation2 + $0x178] sm:$0xff] %v508
    %658 = vst [vmem:[#allocation2 + $0x180] sm:$0xff] %v319
    %659 = vst [vmem:[#allocation2 + $0x188] sm:$0xff] %v321
    %660 = vst [vmem:[#allocation2 + $0x190] sm:$0xff] %v512
    %661 = vst [vmem:[#allocation2 + $0x198] sm:$0xff] %v514
    %662 = vst [vmem:[#allocation2 + $0x1a0] sm:$0xff] %v323
    %663 = vst [vmem:[#allocation2 + $0x1a8] sm:$0xff] %v325
    %664 = vst [vmem:[#allocation2 + $0x1b0] sm:$0xff] %v516
    %665 = vst [vmem:[#allocation2 + $0x1b8] sm:$0xff] %v518
    %666 = vst [vmem:[#allocation2 + $0x1c0] sm:$0xff] %v329
    %667 = vst [vmem:[#allocation2 + $0x1c8] sm:$0xff] %v331
    %668 = vst [vmem:[#allocation2 + $0x1d0] sm:$0xff] %v522
    %669 = vst [vmem:[#allocation2 + $0x1d8] sm:$0xff] %v524
    %670 = vst [vmem:[#allocation2 + $0x1e0] sm:$0xff] %v333
    %671 = vst [vmem:[#allocation2 + $0x1e8] sm:$0xff] %v335
    %672 = vst [vmem:[#allocation2 + $0x1f0] sm:$0xff] %v526
    %673 = vst [vmem:[#allocation2 + $0x1f8] sm:$0xff] %v528
    %674 = vst [vmem:[#allocation2 + $0x200] sm:$0xff] %v339
    %675 = vst [vmem:[#allocation2 + $0x208] sm:$0xff] %v341
    %676 = vst [vmem:[#allocation2 + $0x210] sm:$0xff] %v532
    %677 = vst [vmem:[#allocation2 + $0x218] sm:$0xff] %v534
    %678 = vst [vmem:[#allocation2 + $0x220] sm:$0xff] %v343
    %679 = vst [vmem:[#allocation2 + $0x228] sm:$0xff] %v345
    %680 = vst [vmem:[#allocation2 + $0x230] sm:$0xff] %v536
    %681 = vst [vmem:[#allocation2 + $0x238] sm:$0xff] %v538
    %682 = vst [vmem:[#allocation2 + $0x240] sm:$0xff] %v349
    %683 = vst [vmem:[#allocation2 + $0x248] sm:$0xff] %v351
    %684 = vst [vmem:[#allocation2 + $0x250] sm:$0xff] %v542
    %685 = vst [vmem:[#allocation2 + $0x258] sm:$0xff] %v544
    %686 = vst [vmem:[#allocation2 + $0x260] sm:$0xff] %v353
    %687 = vst [vmem:[#allocation2 + $0x268] sm:$0xff] %v355
    %688 = vst [vmem:[#allocation2 + $0x270] sm:$0xff] %v546
    %689 = vst [vmem:[#allocation2 + $0x278] sm:$0xff] %v548
    %690 = vst [vmem:[#allocation2 + $0x280] sm:$0xff] %v359
    %691 = vst [vmem:[#allocation2 + $0x288] sm:$0xff] %v361
    %692 = vst [vmem:[#allocation2 + $0x290] sm:$0xff] %v552
    %693 = vst [vmem:[#allocation2 + $0x298] sm:$0xff] %v554
    %694 = vst [vmem:[#allocation2 + $0x2a0] sm:$0xff] %v363
    %695 = vst [vmem:[#allocation2 + $0x2a8] sm:$0xff] %v365
    %696 = vst [vmem:[#allocation2 + $0x2b0] sm:$0xff] %v556
    %697 = vst [vmem:[#allocation2 + $0x2b8] sm:$0xff] %v558
    %698 = vst [vmem:[#allocation2 + $0x2c0] sm:$0xff] %v369
    %699 = vst [vmem:[#allocation2 + $0x2c8] sm:$0xff] %v371
    %700 = vst [vmem:[#allocation2 + $0x2d0] sm:$0xff] %v562
    %701 = vst [vmem:[#allocation2 + $0x2d8] sm:$0xff] %v564
    %702 = vst [vmem:[#allocation2 + $0x2e0] sm:$0xff] %v373
    %703 = vst [vmem:[#allocation2 + $0x2e8] sm:$0xff] %v375
    %704 = vst [vmem:[#allocation2 + $0x2f0] sm:$0xff] %v566
    %705 = vst [vmem:[#allocation2 + $0x2f8] sm:$0xff] %v568
    %706 = vst [vmem:[#allocation2 + $0x300] sm:$0xff] %v379
    %707 = vst [vmem:[#allocation2 + $0x308] sm:$0xff] %v381
    %708 = vst [vmem:[#allocation2 + $0x310] sm:$0xff] %v572
    %709 = vst [vmem:[#allocation2 + $0x318] sm:$0xff] %v574
    %710 = vst [vmem:[#allocation2 + $0x320] sm:$0xff] %v383
    %711 = vst [vmem:[#allocation2 + $0x328] sm:$0xff] %v385
    %712 = vst [vmem:[#allocation2 + $0x330] sm:$0xff] %v576
    %713 = vst [vmem:[#allocation2 + $0x338] sm:$0xff] %v578
    %714 = vst [vmem:[#allocation2 + $0x340] sm:$0xff] %v389
    %715 = vst [vmem:[#allocation2 + $0x348] sm:$0xff] %v391
    %716 = vst [vmem:[#allocation2 + $0x350] sm:$0xff] %v582
    %717 = vst [vmem:[#allocation2 + $0x358] sm:$0xff] %v584
    %718 = vst [vmem:[#allocation2 + $0x360] sm:$0xff] %v393
    %719 = vst [vmem:[#allocation2 + $0x368] sm:$0xff] %v395
    %720 = vst [vmem:[#allocation2 + $0x370] sm:$0xff] %v586
    %721 = vst [vmem:[#allocation2 + $0x378] sm:$0xff] %v588
    %722 = vst [vmem:[#allocation2 + $0x380] sm:$0xff] %v399
    %723 = vst [vmem:[#allocation2 + $0x388] sm:$0xff] %v401
    %724 = vst [vmem:[#allocation2 + $0x390] sm:$0xff] %v592
    %725 = vst [vmem:[#allocation2 + $0x398] sm:$0xff] %v594
    %726 = vst [vmem:[#allocation2 + $0x3a0] sm:$0xff] %v403
    %727 = vst [vmem:[#allocation2 + $0x3a8] sm:$0xff] %v405
    %728 = vst [vmem:[#allocation2 + $0x3b0] sm:$0xff] %v596
    %729 = vst [vmem:[#allocation2 + $0x3b8] sm:$0xff] %v598
    %730 = vst [vmem:[#allocation2 + $0x3c0] sm:$0xff] %v409
    %731 = vst [vmem:[#allocation2 + $0x3c8] sm:$0xff] %v411
    %732 = vst [vmem:[#allocation2 + $0x3d0] sm:$0xff] %v602
    %733 = vst [vmem:[#allocation2 + $0x3d8] sm:$0xff] %v604
    %734 = vst [vmem:[#allocation2 + $0x3e0] sm:$0xff] %v413
    %735 = vst [vmem:[#allocation2 + $0x3e8] sm:$0xff] %v415
    %736 = vst [vmem:[#allocation2 + $0x3f0] sm:$0xff] %v606
    %737 = vst [vmem:[#allocation2 + $0x3f8] sm:$0xff] %v608
    // Predicated region
    $region14: #{tpu_custom_call.1} parent=1 // pred_check
      _
    $region15: #{tpu_custom_call.1} parent=1 // pred_check_branch
      %739 = sbr.rel (0) target = $region17
    $region16: #{tpu_custom_call.1} parent=1 // pred_region
      %s741 = ssub.s32 16384, 16384
      %742 = vsyncadd [#allocation3], %s741
      %s743 = sshll.u32 [#allocation2], 4
      %s744 = int_to_ptr.vmem [resolvable:$true] %s743
      %749 = dma.vmem_to_hbm [thread:$0]  %s744, 16384, %s3, [#allocation3], 512, 512, 32
    $region17: #{tpu_custom_call.1} parent=1 // pred_fallthru
      _
    // Predicated region
    $region18: #{tpu_custom_call.1} parent=1 // pred_check
      _
    $region19: #{tpu_custom_call.1} parent=1 // pred_check_branch
      %751 = sbr.rel (0) target = $region21
    $region20: #{tpu_custom_call.1} parent=1 // pred_region
      %752 = dma.done [#allocation3], 16384
    $region21: #{tpu_custom_call.1} parent=1 // pred_fallthru
      _
    %753 = vsyncpa [#allocation3], 1

</llo_original>
